<compile_context>
chip_gen: v7x
topology: tpu7x:2x2x1
jax: 0.10.0
libtpu: 0.0.40
codegen_flags: <defaults>
</compile_context>

<pallas_src>
import functools
import numpy as np

import jax
import jax.numpy as jnp
from jax.experimental import pallas as pl
from jax.experimental.pallas import tpu as pltpu


# ------------------------------ kernel ---------------------------------------

def _fill_dma_kernel(n_x, n_gen, x_hbm, gen_hbm, out_hbm, sem):
    """fill_feats = vstack(x, gen) via two concurrent HBM->HBM DMAs.

    All refs live in HBM (memory_space=pl.ANY); no VMEM staging, no grid.
    The DMA engine handles arbitrary N / F (no (8,128) BlockSpec constraint).
    """
    copy_x = pltpu.make_async_copy(
        x_hbm, out_hbm.at[pl.ds(0, n_x)], sem.at[0])
    copy_gen = pltpu.make_async_copy(
        gen_hbm, out_hbm.at[pl.ds(n_x, n_gen)], sem.at[1])
    # Issue both, then wait both -> the two copies overlap on the DMA engines.
    copy_x.start()
    copy_gen.start()
    copy_x.wait()
    copy_gen.wait()


# ------------------------------ wrappers --------------------------------------

def _fill_feats_device(x, gen2d):
    """vstack(x, gen2d) at copy bandwidth, entirely via HBM->HBM DMA."""
    N, F = x.shape
    NG = gen2d.shape[0]
    return pl.pallas_call(
        functools.partial(_fill_dma_kernel, N, NG),
        out_shape=jax.ShapeDtypeStruct((N + NG, F), x.dtype),
        in_specs=[pl.BlockSpec(memory_space=pl.ANY),
                  pl.BlockSpec(memory_space=pl.ANY)],
        out_specs=pl.BlockSpec(memory_space=pl.ANY),
        scratch_shapes=[pltpu.SemaphoreType.DMA((2,))],
    )(x, gen2d)


def mend_graph(x, edge_index, pred_missing, gen_feats, num_pred):
    """Pallas-backed equivalent of MendGraph.forward."""
    N, F = x.shape

    # 1) Tiny degree clip in plain jnp, dispatched FIRST so it finishes (and
    #    transfers to host) while the big fill copy below still runs.
    deg = jnp.clip(jnp.round(pred_missing.astype(jnp.float32)),
                   0, num_pred).astype(jnp.int32)

    # 2) Launch the fill copy (does not block).
    gen2d = jnp.reshape(gen_feats, (N * num_pred, F))   # row-major view
    fill_feats = _fill_feats_device(x, gen2d)

    # 3) Host-side edge construction overlaps with the device copy.
    # TODO(synk): fill_edges has a data-dependent length (dynamic shape); it is
    # built on host from the per-node degree vector (only N int32 cross D2H).
    counts = np.asarray(jax.device_get(deg)).reshape(N).astype(np.int64)
    total = int(counts.sum())
    src = np.repeat(np.arange(N, dtype=np.int64), counts)
    starts = np.repeat(np.cumsum(counts) - counts, counts)
    j = np.arange(total, dtype=np.int64) - starts
    dst = N + src * num_pred + j
    new_edges = np.stack([src, dst]).astype(np.int64)
    ei = np.asarray(edge_index).astype(np.int64)
    fill_edges = np.concatenate([ei, new_edges], axis=1)

    return fill_feats, fill_edges


# ------------------------------ reference ------------------------------------

def _reference_mend(x, edge_index, pred_missing, gen_feats, num_pred):
    """Pure-numpy replica of the PyTorch module for verification."""
    x = np.asarray(x)
    N, F = x.shape
    gen = np.asarray(gen_feats).reshape(-1, F)
    fill_feats = np.vstack([x, gen])
    deg = np.rint(np.asarray(pred_missing)).astype(np.int32)  # half-to-even, like torch.round
    new_edges = []
    for i in range(N):
        for j in range(min(num_pred, max(0, int(deg[i])))):
            new_edges.append([i, N + i * num_pred + j])
    new_edges = np.asarray(new_edges, dtype=np.int64).reshape(-1, 2).T
    fill_edges = np.concatenate(
        [np.asarray(edge_index).astype(np.int64), new_edges], axis=1)
    return fill_feats, fill_edges


if __name__ == "__main__":
    NUM_PRED = 4
    N, F, E = 16, 128, 24

    key = jax.random.PRNGKey(0)
    k1, k2, k3, k4 = jax.random.split(key, 4)

    x = jax.random.normal(k1, (N, F), dtype=jnp.float32)
    edge_index = jax.random.randint(k2, (2, E), 0, N, dtype=jnp.int32)
    # predicted missing-degree (float; includes <0 and >num_pred to exercise clamping)
    pred_missing = jax.random.uniform(k3, (N,), dtype=jnp.float32,
                                      minval=-1.0, maxval=NUM_PRED + 1.5)
    gen_feats = jax.random.normal(k4, (N, NUM_PRED * F), dtype=jnp.float32)

    fill_feats, fill_edges = mend_graph(x, edge_index, pred_missing, gen_feats, NUM_PRED)
    fill_feats = jax.block_until_ready(fill_feats)

    ref_feats, ref_edges = _reference_mend(x, edge_index, pred_missing, gen_feats, NUM_PRED)
    np.testing.assert_allclose(np.asarray(fill_feats), ref_feats, rtol=1e-6, atol=1e-6)
    np.testing.assert_array_equal(fill_edges, ref_edges)

    print("KERNEL_OK")
</pallas_src>

<mosaic_0001>
module attributes {stable_mosaic.version = 11 : i64} {
  func.func @_fill_dma_kernel(%arg0: memref<16x128xf32, #tpu.memory_space<any>>, %arg1: memref<64x128xf32, #tpu.memory_space<any>>, %arg2: memref<80x128xf32, #tpu.memory_space<any>>, %arg3: memref<2x!tpu.dma_semaphore, #tpu.memory_space<semaphore_mem>>) attributes {dimension_semantics = [], scalar_prefetch = 0 : i64, scratch_operands = 1 : i64, tpu.core_type = #tpu.core_type<tc>} {
    %c0_i32 = arith.constant 0 : i32
    %c0_i32_0 = arith.constant 0 : i32
    %c0_i32_1 = arith.constant 0 : i32
    %0 = tpu.memref_slice %arg2[%c0_i32_0, %c0_i32_1] : memref<80x128xf32, #tpu.memory_space<any>> -> memref<16x128xf32, #tpu.memory_space<any>>
    %1 = tpu.memref_slice %arg3[%c0_i32] : memref<2x!tpu.dma_semaphore, #tpu.memory_space<semaphore_mem>> -> memref<1x!tpu.dma_semaphore, #tpu.memory_space<semaphore_mem>>
    %2 = tpu.memref_squeeze %1 : memref<1x!tpu.dma_semaphore, #tpu.memory_space<semaphore_mem>> -> memref<!tpu.dma_semaphore, #tpu.memory_space<semaphore_mem>>
    tpu.enqueue_dma source(%arg0 : memref<16x128xf32, #tpu.memory_space<any>>) target(%0 : memref<16x128xf32, #tpu.memory_space<any>>) target_semaphore(%2 : memref<!tpu.dma_semaphore, #tpu.memory_space<semaphore_mem>>)
    %c1_i32 = arith.constant 1 : i32
    %c16_i32 = arith.constant 16 : i32
    %c0_i32_2 = arith.constant 0 : i32
    %3 = tpu.memref_slice %arg2[%c16_i32, %c0_i32_2] : memref<80x128xf32, #tpu.memory_space<any>> -> memref<64x128xf32, #tpu.memory_space<any>>
    %4 = tpu.memref_slice %arg3[%c1_i32] : memref<2x!tpu.dma_semaphore, #tpu.memory_space<semaphore_mem>> -> memref<1x!tpu.dma_semaphore, #tpu.memory_space<semaphore_mem>>
    %5 = tpu.memref_squeeze %4 : memref<1x!tpu.dma_semaphore, #tpu.memory_space<semaphore_mem>> -> memref<!tpu.dma_semaphore, #tpu.memory_space<semaphore_mem>>
    tpu.enqueue_dma source(%arg1 : memref<64x128xf32, #tpu.memory_space<any>>) target(%3 : memref<64x128xf32, #tpu.memory_space<any>>) target_semaphore(%5 : memref<!tpu.dma_semaphore, #tpu.memory_space<semaphore_mem>>)
    %c0_i32_3 = arith.constant 0 : i32
    %c0_i32_4 = arith.constant 0 : i32
    %c0_i32_5 = arith.constant 0 : i32
    %6 = tpu.memref_slice %arg2[%c0_i32_4, %c0_i32_5] : memref<80x128xf32, #tpu.memory_space<any>> -> memref<16x128xf32, #tpu.memory_space<any>>
    %7 = tpu.memref_slice %arg3[%c0_i32_3] : memref<2x!tpu.dma_semaphore, #tpu.memory_space<semaphore_mem>> -> memref<1x!tpu.dma_semaphore, #tpu.memory_space<semaphore_mem>>
    %8 = tpu.memref_squeeze %7 : memref<1x!tpu.dma_semaphore, #tpu.memory_space<semaphore_mem>> -> memref<!tpu.dma_semaphore, #tpu.memory_space<semaphore_mem>>
    tpu.wait_dma2 semaphore(%8 : memref<!tpu.dma_semaphore, #tpu.memory_space<semaphore_mem>>) src(%arg0 : memref<16x128xf32, #tpu.memory_space<any>>) dst(%6 : memref<16x128xf32, #tpu.memory_space<any>>)
    %c1_i32_6 = arith.constant 1 : i32
    %c16_i32_7 = arith.constant 16 : i32
    %c0_i32_8 = arith.constant 0 : i32
    %9 = tpu.memref_slice %arg2[%c16_i32_7, %c0_i32_8] : memref<80x128xf32, #tpu.memory_space<any>> -> memref<64x128xf32, #tpu.memory_space<any>>
    %10 = tpu.memref_slice %arg3[%c1_i32_6] : memref<2x!tpu.dma_semaphore, #tpu.memory_space<semaphore_mem>> -> memref<1x!tpu.dma_semaphore, #tpu.memory_space<semaphore_mem>>
    %11 = tpu.memref_squeeze %10 : memref<1x!tpu.dma_semaphore, #tpu.memory_space<semaphore_mem>> -> memref<!tpu.dma_semaphore, #tpu.memory_space<semaphore_mem>>
    tpu.wait_dma2 semaphore(%11 : memref<!tpu.dma_semaphore, #tpu.memory_space<semaphore_mem>>) src(%arg1 : memref<64x128xf32, #tpu.memory_space<any>>) dst(%9 : memref<64x128xf32, #tpu.memory_space<any>>)
    return
  }
}

</mosaic_0001>

<llo_original>
// kernel: tpu_custom_call.1
$region0: #{tpu_custom_call.1}
  #allocation0 [shape = 'u32[]', space=smem, size = 0x4, offset = 0x4, fixed_abs, tag = 'smem constant byte address 0x4 - core index']
  #allocation1 [shape = 'u32[144,128]{1,0:T(1,128)}', space=vmem, size = 0x12000, scoped, tag = 'internal scratch']
  #allocation2 [shape = 's32[2]{0}', space=sflag, size = 0x8, scoped, tag = 'scratch operand']
  #allocation3 [shape = 's32[]', space=sflag, size = 0x4, offset = 0, fixed_abs, tag = 'sflag constant byte address 0x0 - dummy sync flag']
  #allocation4 [shape = 'u32[0]{0}', space=smem, size = 0, offset = 0, fixed_abs, tag = 'smem constant byte address 0x0 - null']
  #allocation5 [shape = 's32[]', space=sflag, size = 0x4, offset = 0, fixed_abs, tag = 'sflag constant byte address 0x0 - dummy sync flag']
  #allocation6 [shape = 'u32[0]{0}', space=smem, size = 0, offset = 0, fixed_abs, tag = 'smem constant byte address 0x0 - null']
  %s0 = inlined_call_operand.hbm [shape: f32[16,128], index: 0, kind: input, shape index: {}]
  %s1 = inlined_call_operand.hbm [shape: f32[64,128], index: 1, kind: input, shape index: {}]
  %s2 = inlined_call_operand.hbm [shape: f32[80,128], index: 2, kind: output, shape index: {}]
  %s3 = sld [smem:[#allocation0]]
  $region2: #{tpu_custom_call.1} parent=0
    _
  %s5 = ssub.s32 1, %s3
  %s6 = scalar_select 0, %s5, %s3
  %s8 = sshll.u32 1, 14
  %s9 = sxor.u32 4294967295, %s8
  %s12 = sshll.u32 3, 24
  %s13 = sxor.u32 4294967295, %s12
  %s14 = sand.u32 0, %s13
  %s16 = sor.u32 %s14, 0
  %19 = dma.general %s0, 256, %s2, [#allocation2], [#allocation3], [#allocation4], %s16, 0
  %s20 = scalar_lea.hbm %s2, 256
  %s21 = scalar_lea.sflag [#allocation2], 1
  %s23 = sshll.u32 1, 14
  %s24 = sxor.u32 4294967295, %s23
  %s27 = sshll.u32 3, 24
  %s28 = sxor.u32 4294967295, %s27
  %s29 = sand.u32 0, %s28
  %s31 = sor.u32 %s29, 0
  %34 = dma.general %s1, 1024, %s20, %s21, [#allocation5], [#allocation6], %s31, 0
  %s35 = smul.u32 16, 1
  %s36 = sshll.u32 %s35, 4
  %37 = dma.done [#allocation2], %s36
  %s38 = smul.u32 64, 1
  %s39 = sshll.u32 %s38, 4
  %40 = dma.done %s21, %s39
  %41 = vsyncmov [#allocation2]
  %s42 = vpop.sfrf %41
  %p43 = scmp.eq.s32.totalorder %s42, 0
  %p44 = pneg %p43
  %46 = shalt.err (%p44)
  %s47 = scalar_lea.sflag [#allocation2], 1
  %48 = vsyncmov %s47
  %s49 = vpop.sfrf %48
  %p50 = scmp.eq.s32.totalorder %s49, 0
  %p51 = pneg %p50
  %53 = shalt.err (%p51)

</llo_original>
